<compile_context>
chip_gen: v5e
topology: v5e:2x2
jax: 0.10.0
libtpu: 0.0.40
codegen_flags: <defaults>
</compile_context>

<pallas_src>
import jax
import jax.numpy as jnp
from jax.experimental import pallas as pl
from jax.experimental.pallas import tpu as pltpu


def _round_up(x, m):
    return (x + m - 1) // m * m


def _cdiv(a, b):
    return (a + b - 1) // b


# ---------------------------------------------------------------------------
# Kernel: grid = (batch tiles, vocab/contraction tiles)
# ---------------------------------------------------------------------------
def bow_v2_kernel(x_ref, w1_ref, b1_ref, w2_ref, b2_ref, out_ref, acc_ref):
    k = pl.program_id(1)

    @pl.when(k == 0)
    def _init():
        # Seed the accumulator with b1 so no bias add sits in the steady-state
        # K loop (the broadcast happens only once, in this branch).
        acc_ref[...] = jnp.broadcast_to(b1_ref[...], acc_ref.shape)

    # linear1 partial product for this vocab chunk: bf16 x bf16 -> f32 acc.
    acc_ref[...] += jnp.dot(
        x_ref[...], w1_ref[...], preferred_element_type=jnp.float32
    )

    @pl.when(k == pl.num_programs(1) - 1)
    def _finalize():
        # ReLU, linear2 (+ b2), log_softmax over the (padded) label lanes.
        # NOTE: logits must stay f32 here -- padded label lanes carry a -1e30
        # bias which would overflow to -inf in bf16 and NaN the epilogue.
        h = jnp.maximum(acc_ref[...], 0.0)
        logits = jnp.dot(
            h.astype(w2_ref.dtype), w2_ref[...],
            preferred_element_type=jnp.float32,
        ) + b2_ref[...]
        m = jnp.max(logits, axis=-1, keepdims=True)
        shifted = logits - m
        lse = jnp.log(jnp.sum(jnp.exp(shifted), axis=-1, keepdims=True))
        out_ref[...] = (shifted - lse).astype(out_ref.dtype)


# ---------------------------------------------------------------------------
# Tile selection
# ---------------------------------------------------------------------------
def _device_tile_defaults():
    """Pick (block_b, block_k, vmem_limit_bytes, vmem_budget) per generation."""
    vmem_cap = 64 << 20  # conservative fallback (v7x per-TC physical VMEM)
    try:
        info = pltpu.get_tpu_info()
        vmem_cap = int(getattr(info, "vmem_capacity_bytes", vmem_cap))
    except Exception:
        pass
    if vmem_cap >= (100 << 20):
        # v5e / v6e: 128 MiB physical, 32 MiB scoped default -> raise the limit.
        return 1024, 8192, 64 << 20, 56 << 20
    # v7x: 64 MiB physical, 32 MiB scoped default -> stay inside the default.
    return 512, 8192, None, 28 << 20


def _fit_tiles(TB, TK, H, Lp, itemsize, budget, sub):
    """Shrink tiles if the double-buffered pipeline would not fit the budget."""
    h_lanes = _round_up(H, 128)  # VMEM lane padding, for budgeting only

    def est(tb, tk):
        return (2 * tb * tk * itemsize          # x (double-buffered)
                + 2 * tk * h_lanes * itemsize   # W1 (double-buffered)
                + 2 * h_lanes * Lp * itemsize   # W2
                + 2 * tb * Lp * 4               # out (double-buffered, f32)
                + tb * h_lanes * 4              # f32 accumulator scratch
                + 4 * (h_lanes + Lp) * 4)       # biases (tiny)

    while est(TB, TK) > budget and TK > 512:
        TK //= 2
    while est(TB, TK) > budget and TB > sub:
        TB = max(sub, TB // 2)
    return TB, TK


# ---------------------------------------------------------------------------
# One-time (parameter-init time) layout prep -- hoisted out of the hot path.
# ---------------------------------------------------------------------------
def prepare_bow_params(w1, b1, w2, b2, *, compute_dtype=jnp.bfloat16,
                       block_b=None, block_k=None):
    """Pad/cast weights once and fix the vocab tile TK for this device."""
    V, H = w1.shape
    L = w2.shape[1]
    Lp = _round_up(L, 128)

    dflt_b, dflt_k, vmem_limit, vmem_budget = _device_tile_defaults()
    block_b = dflt_b if block_b is None else block_b
    block_k = dflt_k if block_k is None else block_k

    itemsize = jnp.dtype(compute_dtype).itemsize
    sub = 8 * (4 // itemsize)                  # sublane packing (8 f32 / 16 bf16)
    TK = min(block_k, _round_up(V, 128))
    block_b, TK = _fit_tiles(block_b, TK, H, Lp, itemsize, vmem_budget, sub)
    Vp = _round_up(V, TK)

    # Zero-pad W1 along V (zero rows contribute nothing to the accumulator).
    # No padding along H: a full-dim H block is legal and saves W1 bytes.
    w1_p = jnp.zeros((Vp, H), compute_dtype).at[:V, :].set(
        w1.astype(compute_dtype))
    b1_p = b1.reshape(1, -1).astype(jnp.float32)
    w2_p = jnp.zeros((H, Lp), compute_dtype).at[:, :L].set(
        w2.astype(compute_dtype))
    # Large negative bias in padded label lanes -> they vanish in log_softmax.
    b2_p = jnp.full((1, Lp), -1e30, jnp.float32).at[:, :L].set(
        b2.reshape(1, -1).astype(jnp.float32))

    return dict(w1=w1_p, b1=b1_p, w2=w2_p, b2=b2_p,
                V=V, Vp=Vp, H=H, L=L, Lp=Lp, TK=TK,
                block_b=block_b, sub=sub, compute_dtype=compute_dtype,
                vmem_limit=vmem_limit)


# ---------------------------------------------------------------------------
# Hot path
# ---------------------------------------------------------------------------
def bow_module_v2_apply(bow_vec, params):
    """Pads/casts x only when needed, then runs the fused kernel.

    For peak throughput the producer should hand `bow_vec` already in
    params['compute_dtype'] (bf16) with aligned B -- then no extra HBM pass
    over the dominant x stream happens here at all.
    """
    cd = params["compute_dtype"]
    V, Vp, H, L, Lp, TK = (params[k] for k in ("V", "Vp", "H", "L", "Lp", "TK"))
    sub = params["sub"]

    B = bow_vec.shape[0]
    assert bow_vec.shape[1] == V

    TB = min(params["block_b"], _round_up(B, sub))
    # Give the "parallel" batch axis at least 2 blocks when there is enough
    # work, so v7x's two TensorCores both get a shard (harmless on 1-TC chips).
    if B >= 2 * sub:
        TB = min(TB, _round_up(_cdiv(B, 2), sub))
    Bp = _round_up(B, TB)
    nb = Bp // TB
    nk = Vp // TK

    x = bow_vec
    if x.dtype != cd:
        # TODO(synk): accept bf16 x straight from the producer to avoid this
        # extra full pass over the dominant HBM stream (note: counts > 256 are
        # not exactly representable in bf16).
        x = x.astype(cd)
    if (Bp, Vp) != (B, V):
        x = jnp.zeros((Bp, Vp), cd).at[:B, :V].set(x)

    itemsize = jnp.dtype(cd).itemsize
    flops = 2 * Bp * Vp * H + 2 * Bp * H * Lp
    bytes_accessed = (
        Bp * Vp * itemsize          # x, streamed once
        + nb * Vp * H * itemsize    # W1, re-streamed once per batch tile
        + H * Lp * itemsize         # W2 (resident across the grid)
        + (H + Lp) * 4              # biases
        + Bp * Lp * 4               # output
    )

    out_p = pl.pallas_call(
        bow_v2_kernel,
        out_shape=jax.ShapeDtypeStruct((Bp, Lp), jnp.float32),
        grid=(nb, nk),
        in_specs=[
            pl.BlockSpec((TB, TK), lambda i, k: (i, k)),   # x
            pl.BlockSpec((TK, H), lambda i, k: (k, 0)),    # W1 (full-H block)
            pl.BlockSpec((1, H), lambda i, k: (0, 0)),     # b1
            pl.BlockSpec((H, Lp), lambda i, k: (0, 0)),    # W2
            pl.BlockSpec((1, Lp), lambda i, k: (0, 0)),    # b2
        ],
        out_specs=pl.BlockSpec((TB, Lp), lambda i, k: (i, 0)),
        scratch_shapes=[pltpu.VMEM((TB, H), jnp.float32)],
        compiler_params=pltpu.CompilerParams(
            dimension_semantics=("parallel", "arbitrary"),
            vmem_limit_bytes=params["vmem_limit"]),
        cost_estimate=pl.CostEstimate(
            flops=int(flops),
            transcendentals=int(Bp * Lp),
            bytes_accessed=int(bytes_accessed)),
    )(x, params["w1"], params["b1"], params["w2"], params["b2"])

    return out_p[:B, :L]


def bow_module_v2(bow_vec, w1, b1, w2, b2, *, compute_dtype=jnp.bfloat16,
                  block_b=None, block_k=None):
    """Convenience wrapper: one-shot prepare + apply."""
    params = prepare_bow_params(w1, b1, w2, b2, compute_dtype=compute_dtype,
                                block_b=block_b, block_k=block_k)
    return bow_module_v2_apply(bow_vec, params)


# ---------------------------------------------------------------------------
# References
# ---------------------------------------------------------------------------
def reference(bow_vec, w1, b1, w2, b2, compute_dtype=jnp.bfloat16):
    """Pure-JAX reference mirroring the kernel's compute dtype."""
    b1 = b1.reshape(1, -1)
    b2 = b2.reshape(1, -1)
    x = bow_vec.astype(compute_dtype)
    h = jnp.dot(x, w1.astype(compute_dtype),
                preferred_element_type=jnp.float32) + b1.astype(jnp.float32)
    h = jnp.maximum(h, 0.0)
    logits = jnp.dot(h.astype(compute_dtype), w2.astype(compute_dtype),
                     preferred_element_type=jnp.float32) + b2.astype(jnp.float32)
    return jax.nn.log_softmax(logits, axis=1)


def reference_f32(bow_vec, w1, b1, w2, b2):
    h = jnp.maximum(bow_vec @ w1 + b1.reshape(1, -1), 0.0)
    logits = h @ w2 + b2.reshape(1, -1)
    return jax.nn.log_softmax(logits, axis=1)


if __name__ == "__main__":
    # Small shapes consistent with the module's forward:
    #   bow_vec: (batch, vocab_size) -> outputs: (batch, num_labels)
    batch = 8
    vocab_size = 128
    d_hidden = 32
    num_labels = 8

    key = jax.random.PRNGKey(0)
    kx, kw1, kb1, kw2, kb2 = jax.random.split(key, 5)

    # Deterministic synthetic parameters (Linear: W stored as (in, out)).
    bow_vec = jax.random.normal(kx, (batch, vocab_size), dtype=jnp.float32)
    w1 = jax.random.normal(kw1, (vocab_size, d_hidden), dtype=jnp.float32) * 0.05
    b1 = jax.random.normal(kb1, (1, d_hidden), dtype=jnp.float32) * 0.05
    w2 = jax.random.normal(kw2, (d_hidden, num_labels), dtype=jnp.float32) * 0.05
    b2 = jax.random.normal(kb2, (1, num_labels), dtype=jnp.float32) * 0.05

    params = prepare_bow_params(w1, b1, w2, b2)   # one-time layout prep
    out = bow_module_v2_apply(bow_vec, params)    # hot path
    out = jax.block_until_ready(out)
    assert out.shape == (batch, num_labels)
    assert bool(jnp.all(jnp.isfinite(out)))

    # Exact-semantics check against a reference using the same bf16 matmul /
    # f32 accumulation recipe as the kernel.
    ref_bf16 = reference(bow_vec, w1, b1, w2, b2)
    assert jnp.allclose(out, ref_bf16, atol=2e-3, rtol=2e-3), \
        "mismatch vs dtype-matched reference"

    # Loose check against the full-f32 PyTorch-equivalent forward.
    ref_full = reference_f32(bow_vec, w1, b1, w2, b2)
    assert jnp.allclose(out, ref_full, atol=1e-1, rtol=1e-1), \
        "mismatch vs f32 reference"

    print("KERNEL_OK")
</pallas_src>

<mosaic_0001>
module attributes {stable_mosaic.version = 11 : i64} {
  func.func @bow_v2_kernel(%arg0: i32, %arg1: i32, %arg2: memref<16x128xbf16, #tpu.memory_space<vmem>>, %arg3: memref<128x32xbf16, #tpu.memory_space<vmem>>, %arg4: memref<1x32xf32, #tpu.memory_space<vmem>>, %arg5: memref<32x128xbf16, #tpu.memory_space<vmem>>, %arg6: memref<1x128xf32, #tpu.memory_space<vmem>>, %arg7: memref<16x128xf32, #tpu.memory_space<vmem>>, %arg8: memref<16x32xf32, #tpu.memory_space<vmem>>) attributes {dimension_semantics = [#tpu.dimension_semantics<parallel>, #tpu.dimension_semantics<arbitrary>], iteration_bounds = array<i64: 1, 1>, scalar_prefetch = 0 : i64, scratch_operands = 1 : i64, tpu.core_type = #tpu.core_type<tc>, window_params = [{transform_indices = @transform_0, window_bounds = array<i64: 16, 128>}, {transform_indices = @transform_1, window_bounds = array<i64: 128, 32>}, {pipeline_mode = #tpu.pipeline_mode<synchronous>, transform_indices = @transform_2, window_bounds = array<i64: 1, 32>}, {pipeline_mode = #tpu.pipeline_mode<synchronous>, transform_indices = @transform_3, window_bounds = array<i64: 32, 128>}, {pipeline_mode = #tpu.pipeline_mode<synchronous>, transform_indices = @transform_4, window_bounds = array<i64: 1, 128>}, {transform_indices = @transform_5, window_bounds = array<i64: 16, 128>}]} {
    %c0_i32 = arith.constant 0 : i32
    %0 = arith.cmpi eq, %arg1, %c0_i32 : i32
    %1 = arith.extui %0 : i1 to i32
    %c0_i32_0 = arith.constant 0 : i32
    %2 = arith.cmpi ne, %1, %c0_i32_0 : i32
    scf.if %2 {
      %c0_10 = arith.constant 0 : index
      %c0_11 = arith.constant 0 : index
      %12 = vector.load %arg4[%c0_10, %c0_11] : memref<1x32xf32, #tpu.memory_space<vmem>>, vector<1x32xf32>
      %13 = vector.shape_cast %12 : vector<1x32xf32> to vector<1x32xf32>
      %14 = vector.broadcast %13 : vector<1x32xf32> to vector<16x32xf32>
      %c0_12 = arith.constant 0 : index
      %c0_13 = arith.constant 0 : index
      %15 = vector.load %arg8[%c0_12, %c0_13] : memref<16x32xf32, #tpu.memory_space<vmem>>, vector<16x32xf32>
      tpu.vector_store %arg8[%c0_12, %c0_13], %14 {strides = array<i32>} : memref<16x32xf32, #tpu.memory_space<vmem>>, vector<16x32xf32>,
    } else {
    }
    %c0 = arith.constant 0 : index
    %c0_1 = arith.constant 0 : index
    %3 = vector.load %arg8[%c0, %c0_1] : memref<16x32xf32, #tpu.memory_space<vmem>>, vector<16x32xf32>
    %c0_2 = arith.constant 0 : index
    %c0_3 = arith.constant 0 : index
    %4 = vector.load %arg2[%c0_2, %c0_3] : memref<16x128xbf16, #tpu.memory_space<vmem>>, vector<16x128xbf16>
    %c0_4 = arith.constant 0 : index
    %c0_5 = arith.constant 0 : index
    %5 = vector.load %arg3[%c0_4, %c0_5] : memref<128x32xbf16, #tpu.memory_space<vmem>>, vector<128x32xbf16>
    %cst = arith.constant dense<0.000000e+00> : vector<16x32xf32>
    %6 = tpu.matmul %4, %5, %cst {dimension_numbers = #tpu.dot_dimension_numbers<[1], [0], [0], [1], [0, 0, 1, 1], [], []>} : vector<16x128xbf16>, vector<128x32xbf16>, vector<16x32xf32> -> vector<16x32xf32>
    %7 = arith.addf %3, %6 : vector<16x32xf32>
    %c0_6 = arith.constant 0 : index
    %c0_7 = arith.constant 0 : index
    %8 = vector.load %arg8[%c0_6, %c0_7] : memref<16x32xf32, #tpu.memory_space<vmem>>, vector<16x32xf32>
    tpu.vector_store %arg8[%c0_6, %c0_7], %7 {strides = array<i32>} : memref<16x32xf32, #tpu.memory_space<vmem>>, vector<16x32xf32>,
    %c0_i32_8 = arith.constant 0 : i32
    %9 = arith.cmpi eq, %arg1, %c0_i32_8 : i32
    %10 = arith.extui %9 : i1 to i32
    %c0_i32_9 = arith.constant 0 : i32
    %11 = arith.cmpi ne, %10, %c0_i32_9 : i32
    scf.if %11 {
      %c0_10 = arith.constant 0 : index
      %c0_11 = arith.constant 0 : index
      %12 = vector.load %arg8[%c0_10, %c0_11] : memref<16x32xf32, #tpu.memory_space<vmem>>, vector<16x32xf32>
      %cst_12 = arith.constant 0.000000e+00 : f32
      %13 = vector.broadcast %cst_12 : f32 to vector<16x32xf32>
      %14 = arith.maximumf %12, %13 : vector<16x32xf32>
      %15 = arith.truncf %14 : vector<16x32xf32> to vector<16x32xbf16>
      %c0_13 = arith.constant 0 : index
      %c0_14 = arith.constant 0 : index
      %16 = vector.load %arg5[%c0_13, %c0_14] : memref<32x128xbf16, #tpu.memory_space<vmem>>, vector<32x128xbf16>
      %cst_15 = arith.constant dense<0.000000e+00> : vector<16x128xf32>
      %17 = tpu.matmul %15, %16, %cst_15 {dimension_numbers = #tpu.dot_dimension_numbers<[1], [0], [0], [1], [0, 0, 1, 1], [], []>} : vector<16x32xbf16>, vector<32x128xbf16>, vector<16x128xf32> -> vector<16x128xf32>
      %c0_16 = arith.constant 0 : index
      %c0_17 = arith.constant 0 : index
      %18 = vector.load %arg6[%c0_16, %c0_17] : memref<1x128xf32, #tpu.memory_space<vmem>>, vector<1x128xf32>
      %19 = vector.broadcast %18 : vector<1x128xf32> to vector<16x128xf32>
      %20 = arith.addf %17, %19 : vector<16x128xf32>
      %cst_18 = arith.constant dense<0xFF800000> : vector<16xf32>
      %21 = vector.multi_reduction <maximumf>, %20, %cst_18 [1] : vector<16x128xf32> to vector<16xf32>
      %22 = vector.shape_cast %21 : vector<16xf32> to vector<16x1xf32>
      %23 = vector.broadcast %22 : vector<16x1xf32> to vector<16x128xf32>
      %24 = arith.subf %20, %23 : vector<16x128xf32>
      %25 = math.exp %24 : vector<16x128xf32>
      %cst_19 = arith.constant dense<0.000000e+00> : vector<16xf32>
      %26 = vector.multi_reduction <add>, %25, %cst_19 [1] : vector<16x128xf32> to vector<16xf32>
      %27 = vector.shape_cast %26 : vector<16xf32> to vector<16x1xf32>
      %28 = math.log %27 : vector<16x1xf32>
      %29 = vector.broadcast %28 : vector<16x1xf32> to vector<16x128xf32>
      %30 = arith.subf %24, %29 : vector<16x128xf32>
      %c0_20 = arith.constant 0 : index
      %c0_21 = arith.constant 0 : index
      %31 = vector.load %arg7[%c0_20, %c0_21] : memref<16x128xf32, #tpu.memory_space<vmem>>, vector<16x128xf32>
      tpu.vector_store %arg7[%c0_20, %c0_21], %30 {strides = array<i32>} : memref<16x128xf32, #tpu.memory_space<vmem>>, vector<16x128xf32>,
    } else {
    }
    return
  }
  func.func @transform_0(%arg0: i32, %arg1: i32) -> (i32, i32) {
    %c0_i32 = arith.constant 0 : i32
    return %arg0, %arg1 : i32, i32
  }
  func.func @transform_1(%arg0: i32, %arg1: i32) -> (i32, i32) {
    %c0_i32 = arith.constant 0 : i32
    %c0_i32_0 = arith.constant 0 : i32
    return %arg1, %c0_i32 : i32, i32
  }
  func.func @transform_2(%arg0: i32, %arg1: i32) -> (i32, i32) {
    %c0_i32 = arith.constant 0 : i32
    %c0_i32_0 = arith.constant 0 : i32
    %c0_i32_1 = arith.constant 0 : i32
    return %c0_i32, %c0_i32_0 : i32, i32
  }
  func.func @transform_3(%arg0: i32, %arg1: i32) -> (i32, i32) {
    %c0_i32 = arith.constant 0 : i32
    %c0_i32_0 = arith.constant 0 : i32
    %c0_i32_1 = arith.constant 0 : i32
    return %c0_i32, %c0_i32_0 : i32, i32
  }
  func.func @transform_4(%arg0: i32, %arg1: i32) -> (i32, i32) {
    %c0_i32 = arith.constant 0 : i32
    %c0_i32_0 = arith.constant 0 : i32
    %c0_i32_1 = arith.constant 0 : i32
    return %c0_i32, %c0_i32_0 : i32, i32
  }
  func.func @transform_5(%arg0: i32, %arg1: i32) -> (i32, i32) {
    %c0_i32 = arith.constant 0 : i32
    %c0_i32_0 = arith.constant 0 : i32
    return %arg0, %c0_i32 : i32, i32
  }
}

</mosaic_0001>

<llo_original>
// kernel: tpu_custom_call.1
$region0: #{tpu_custom_call.1}
  #allocation0 [shape = 'u32[]', space=smem, size = 0x4, offset = 0x4, fixed_abs, tag = 'smem constant byte address 0x4 - core index']
  #allocation1 [shape = 'u32[72,128]{1,0:T(1,128)}', space=vmem, size = 0x9000, scoped, tag = 'internal scratch']
  #allocation2 [shape = 'f32[16,32]{1,0:T(8,128)}', space=vmem, size = 0x2000, scoped, tag = 'scratch operand']
  %s0 = inlined_call_operand.vmem [shape: bf16[16,128], index: 0, kind: input, shape index: {}]
  %s1 = inlined_call_operand.vmem [shape: bf16[128,32], index: 1, kind: input, shape index: {}]
  %s2 = inlined_call_operand.vmem [shape: f32[1,32], index: 2, kind: input, shape index: {}]
  %s3 = inlined_call_operand.vmem [shape: bf16[32,128], index: 3, kind: input, shape index: {}]
  %s4 = inlined_call_operand.vmem [shape: f32[1,128], index: 4, kind: input, shape index: {}]
  %s5 = inlined_call_operand.hbm [shape: f32[16,128], index: 5, kind: output, shape index: {}]
  %s6 = sld [smem:[#allocation0]]
  $region38: #{tpu_custom_call.1} parent=0
    _
  %s8 = ssub.s32 1, %s6
  %s9 = scalar_select 0, %s8, %s6
  $region1: #{tpu_custom_call.1} parent=0
    #allocation3 [shape = 'u8[8192]{0}', space=vmem, size = 0x2000, scoped, tag = 'output window, operand 0, single buffered']
    #allocation4 [shape = 's32[1]{0}', space=sflag, size = 0x4, scoped, tag = 'scoped memory for tpu_custom_call.1']
    %10 = vsyncpa [#allocation4], 0
    // Predicated region
    $region2: #{tpu_custom_call.1} parent=1 // pred_check
      _
    $region3: #{tpu_custom_call.1} parent=1 // pred_check_branch
      %12 = sbr.rel (0) target = $region5
    $region4: #{tpu_custom_call.1} parent=1 // pred_region
      _
    $region5: #{tpu_custom_call.1} parent=1 // pred_fallthru
      _
    // Predicated region
    $region6: #{tpu_custom_call.1} parent=1 // pred_check
      _
    $region7: #{tpu_custom_call.1} parent=1 // pred_check_branch
      %14 = sbr.rel (0) target = $region9
    $region8: #{tpu_custom_call.1} parent=1 // pred_region
      _
    $region9: #{tpu_custom_call.1} parent=1 // pred_fallthru
      _
    // Predicated region
    $region10: #{tpu_custom_call.1} parent=1 // pred_check
      _
    $region11: #{tpu_custom_call.1} parent=1 // pred_check_branch
      %16 = sbr.rel (0) target = $region13
    $region12: #{tpu_custom_call.1} parent=1 // pred_region
      _
    $region13: #{tpu_custom_call.1} parent=1 // pred_fallthru
      _
    // Predicated region
    $region14: #{tpu_custom_call.1} parent=1 // pred_check
      _
    $region15: #{tpu_custom_call.1} parent=1 // pred_check_branch
      %18 = sbr.rel (0) target = $region17
    $region16: #{tpu_custom_call.1} parent=1 // pred_region
      _
    $region17: #{tpu_custom_call.1} parent=1 // pred_fallthru
      _
    // Predicated region
    $region18: #{tpu_custom_call.1} parent=1 // pred_check
      _
    $region19: #{tpu_custom_call.1} parent=1 // pred_check_branch
      %20 = sbr.rel (0) target = $region21
    $region20: #{tpu_custom_call.1} parent=1 // pred_region
      _
    $region21: #{tpu_custom_call.1} parent=1 // pred_fallthru
      _
    %p22 = scmp.eq.s32.totalorder 0, 0
    // Predicated region
    $region22: #{tpu_custom_call.1} parent=1 // pred_check
      %p23 = pneg %p22
    $region23: #{tpu_custom_call.1} parent=1 // pred_check_branch
      %25 = sbr.rel (%p23) target = $region25
    $region24: #{tpu_custom_call.1} parent=1 // pred_region
      %v26 = vld [vmem:[%s2] sm:$0x1]
      %v28 = vperm.slane %v26, 0
      %vm30 = vcmask 261120
      %31 = vst.msk [vmem:[#allocation2] sm:$0xff] %vm30, %v28
      %32 = vst.msk [vmem:[#allocation2 + $0x8] sm:$0xff] %vm30, %v28
    $region25: #{tpu_custom_call.1} parent=1 // pred_fallthru
      _
    %v33 = vld [vmem:[#allocation2] sm:$0xff]
    %v34 = vld [vmem:[#allocation2 + $0x8] sm:$0xff]
    %v35 = vld [vmem:[%s0] sm:$0xf]
    %v36 = vld [vmem:[%s0 + $0x4] sm:$0xf]
    %v37 = vld [vmem:[%s1] sm:$0xf]
    %v38 = vld [vmem:[%s1 + $0x4] sm:$0xf]
    %v39 = vld [vmem:[%s1 + $0x8] sm:$0xf]
    %v40 = vld [vmem:[%s1 + $0xc] sm:$0xf]
    %v41 = vld [vmem:[%s1 + $0x10] sm:$0xf]
    %v42 = vld [vmem:[%s1 + $0x14] sm:$0xf]
    %v43 = vld [vmem:[%s1 + $0x18] sm:$0xf]
    %v44 = vld [vmem:[%s1 + $0x1c] sm:$0xf]
    %v45 = vld [vmem:[%s1 + $0x20] sm:$0xf]
    %v46 = vld [vmem:[%s1 + $0x24] sm:$0xf]
    %v47 = vld [vmem:[%s1 + $0x28] sm:$0xf]
    %v48 = vld [vmem:[%s1 + $0x2c] sm:$0xf]
    %v49 = vld [vmem:[%s1 + $0x30] sm:$0xf]
    %v50 = vld [vmem:[%s1 + $0x34] sm:$0xf]
    %v51 = vld [vmem:[%s1 + $0x38] sm:$0xf]
    %v52 = vld [vmem:[%s1 + $0x3c] sm:$0xf]
    %v55 = vunpack.c.l.b16 %v35
    %v56 = vunpack.c.l.b16 %v36
    %v57 = vpack.c.b16 %v56, %v55
    %v75 = vunpack.c.l.b16 %v37
    %v76 = vunpack.c.l.b16 %v38
    %v77 = vunpack.c.l.b16 %v39
    %v78 = vunpack.c.l.b16 %v40
    %v79 = vunpack.c.l.b16 %v41
    %v80 = vunpack.c.l.b16 %v42
    %v81 = vunpack.c.l.b16 %v43
    %v82 = vunpack.c.l.b16 %v44
    %v83 = vunpack.c.l.b16 %v45
    %v84 = vunpack.c.l.b16 %v46
    %v85 = vunpack.c.l.b16 %v47
    %v86 = vunpack.c.l.b16 %v48
    %v87 = vunpack.c.l.b16 %v49
    %v88 = vunpack.c.l.b16 %v50
    %v89 = vunpack.c.l.b16 %v51
    %v90 = vunpack.c.l.b16 %v52
    %v91 = vpack.c.b16 %v76, %v75
    %v92 = vpack.c.b16 %v78, %v77
    %v93 = vpack.c.b16 %v80, %v79
    %v94 = vpack.c.b16 %v82, %v81
    %v95 = vpack.c.b16 %v84, %v83
    %v96 = vpack.c.b16 %v86, %v85
    %v97 = vpack.c.b16 %v88, %v87
    %v98 = vpack.c.b16 %v90, %v89
    %107 = vmatpush.bf16.msra.mxu0 %v98
    %108 = vmatpush.bf16.msra.mxu0 %v97
    %109 = vmatpush.bf16.msra.mxu0 %v96
    %110 = vmatpush.bf16.msra.mxu0 %v95
    %111 = vmatpush.bf16.msra.mxu0 %v94
    %112 = vmatpush.bf16.msra.mxu0 %v93
    %113 = vmatpush.bf16.msra.mxu0 %v92
    %114 = vmatpush.bf16.msra.mxu0 %v91
    %115 = vmatmul.bf16.gmra.mxu0 %v57
    %v116 = vpop.f32.mrf.mxu0
    %v117 = vadd.f32 0.0, %v116
    %v118 = vpop.f32.mrf.mxu0
    %v119 = vadd.f32 0.0, %v118
    %120 = vdwg.mxu0
    %v121 = vadd.f32 %v33, %v117
    %v122 = vadd.f32 %v34, %v119
    %vm123 = vcmask 261120
    %124 = vst.msk [vmem:[#allocation2] sm:$0xff] %vm123, %v121
    %125 = vst.msk [vmem:[#allocation2 + $0x8] sm:$0xff] %vm123, %v122
    // Predicated region
    $region26: #{tpu_custom_call.1} parent=1 // pred_check
      %p126 = pneg %p22
    $region27: #{tpu_custom_call.1} parent=1 // pred_check_branch
      %128 = sbr.rel (%p126) target = $region29
    $region28: #{tpu_custom_call.1} parent=1 // pred_region
      %v129 = vld [vmem:[#allocation2] sm:$0xff]
      %v130 = vld [vmem:[#allocation2 + $0x8] sm:$0xff]
      %v131 = vmax.f32 %v129, 0.0
      %v132 = vmax.f32 %v130, 0.0
      %v133 = vpack.c.bf16 %v132, %v131
      %v134 = vld [vmem:[%s3] sm:$0xf]
      %v135 = vld [vmem:[%s3 + $0x4] sm:$0xf]
      %v136 = vld [vmem:[%s3 + $0x8] sm:$0xf]
      %v137 = vld [vmem:[%s3 + $0xc] sm:$0xf]
      %v138 = vld [vmem:[%s4] sm:$0x1]
      %v140 = vperm.slane %v138, 0
      %v146 = vunpack.c.l.b16 %v134
      %v147 = vunpack.c.l.b16 %v135
      %v148 = vunpack.c.l.b16 %v136
      %v149 = vunpack.c.l.b16 %v137
      %v150 = vpack.c.b16 %v147, %v146
      %v151 = vpack.c.b16 %v149, %v148
      %v155 = vsel %vm123, %v133, 0
      %157 = vmatpush.bf16.msra.mxu0 0
      %158 = vmatpush.bf16.msra.mxu0 0
      %159 = vmatpush.bf16.msra.mxu0 0
      %160 = vmatpush.bf16.msra.mxu0 0
      %161 = vmatpush.bf16.msra.mxu0 0
      %162 = vmatpush.bf16.msra.mxu0 0
      %163 = vmatpush.bf16.msra.mxu0 %v151
      %164 = vmatpush.bf16.msra.mxu0 %v150
      %165 = vmatmul.bf16.gmra.mxu0 %v155
      %v166 = vpop.f32.mrf.mxu0
      %v167 = vadd.f32 %v140, %v166
      %v168 = vpop.f32.mrf.mxu0
      %v169 = vadd.f32 %v140, %v168
      %170 = vdwg.mxu0
      %171 = vmax.xlane.f32.xlu0 %v167
      %v172 = vpop.xlane.xlu0 %171
      %173 = vmax.xlane.f32.xlu0 %v169
      %v174 = vpop.xlane.xlu0 %173
      %v175 = vsub.f32 %v167, %v172
      %v176 = vsub.f32 %v169, %v174
      %v177 = vmul.f32 %v175, 1.442695
      %v178 = vpow.pop %v177
      %v179 = vmul.f32 %v176, 1.442695
      %v180 = vpow.pop %v179
      %181 = vadd.xlane.f32.xlu0 %v178
      %v182 = vpop.xlane.xlu0 %181
      %183 = vadd.xlane.f32.xlu0 %v180
      %v184 = vpop.xlane.xlu0 %183
      %v185 = vlog2.pop %v182
      %v186 = vmul.f32 %v185, 0.6931472
      %v187 = vlog2.pop %v184
      %v188 = vmul.f32 %v187, 0.6931472
      %v189 = vsub.f32 %v175, %v186
      %v190 = vsub.f32 %v176, %v188
      %191 = vst [vmem:[#allocation3] sm:$0xff] %v189
      %192 = vst [vmem:[#allocation3 + $0x8] sm:$0xff] %v190
    $region29: #{tpu_custom_call.1} parent=1 // pred_fallthru
      _
    // Predicated region
    $region30: #{tpu_custom_call.1} parent=1 // pred_check
      _
    $region31: #{tpu_custom_call.1} parent=1 // pred_check_branch
      %194 = sbr.rel (0) target = $region33
    $region32: #{tpu_custom_call.1} parent=1 // pred_region
      %196 = vsyncadd [#allocation4], 0
      %s197 = sshll.u32 [#allocation3], 4
      %s198 = int_to_ptr.vmem [resolvable:$true] %s197
      %s199 = sshll.u32 %s5, 4
      %s200 = int_to_ptr.hbm [resolvable:$true] %s199
      %205 = dma.vmem_to_hbm [thread:$0]  %s198, 256, %s200, [#allocation4], 128, 128, 8
    $region33: #{tpu_custom_call.1} parent=1 // pred_fallthru
      _
    // Predicated region
    $region34: #{tpu_custom_call.1} parent=1 // pred_check
      _
    $region35: #{tpu_custom_call.1} parent=1 // pred_check_branch
      %207 = sbr.rel (0) target = $region37
    $region36: #{tpu_custom_call.1} parent=1 // pred_region
      %209 = dma.done [#allocation4], 256
    $region37: #{tpu_custom_call.1} parent=1 // pred_fallthru
      _
    %210 = vsyncpa [#allocation4], 1

</llo_original>
